<compile_context>
chip_gen: v7x
topology: tpu7x:2x2x1
jax: 0.10.0
libtpu: 0.0.40
codegen_flags: <defaults>
</compile_context>

<pallas_src>
import functools

import jax
import jax.numpy as jnp
import numpy as np
from jax import lax
from jax.experimental import pallas as pl
from jax.experimental.pallas import tpu as pltpu

GAMMA = 2.0          # FocalLoss default (== 2, so pow is done as w*w)
OCR_COEFF = 0.4      # Loss default ocr_coeff
_MAX_LANE_TILE = 8192   # max pixels per grid step (multiple of 128)


def _per_lane_focal(x, tgt):
    """x: (C, TM) f32 logits, tgt: (1, TM) i32  ->  (1, TM) focal loss per pixel."""
    m = jnp.max(x, axis=0, keepdims=True)                   # sublane reduce over C
    z = x - m
    lse = jnp.log(jnp.sum(jnp.exp(z), axis=0, keepdims=True))
    logsm = z - lse                                          # (C, TM)
    cls = lax.broadcasted_iota(jnp.int32, x.shape, 0)        # class id per sublane
    logpt = jnp.sum(jnp.where(cls == tgt, logsm, 0.0), axis=0, keepdims=True)
    pt = jnp.exp(logpt)
    w = 1.0 - pt
    return -(w * w) * logpt                                  # gamma == 2


def _focal_sum_kernel(*refs, hw, tm, coeffs):
    """refs = (*logit_refs, tgt_ref, psum_ref, acc_ref).

    Accumulates sum_j( sum_k coeffs[k] * focal_loss_k ) over the HW tiles of one
    batch element into acc_ref, writes the scalar per-batch partial sum to
    psum_ref on the last HW tile.
    """
    n_logits = len(coeffs)
    logit_refs = refs[:n_logits]
    tgt_ref = refs[n_logits]
    psum_ref = refs[n_logits + 1]
    acc_ref = refs[n_logits + 2]

    j = pl.program_id(1)

    @pl.when(j == 0)
    def _():
        acc_ref[...] = jnp.zeros_like(acc_ref)

    tgt = tgt_ref[0]                                         # (1, TM) int32

    loss = jnp.zeros(acc_ref.shape, jnp.float32)             # (1, TM)
    for coef, lref in zip(coeffs, logit_refs):
        x = lref[0].astype(jnp.float32)                      # (C, TM) f32
        loss = loss + coef * _per_lane_focal(x, tgt)

    if hw % tm != 0:   # static: only the ragged-tail case needs masking
        lane = lax.broadcasted_iota(jnp.int32, loss.shape, 1)
        loss = jnp.where(j * tm + lane < hw, loss, 0.0)

    acc_ref[...] += loss

    @pl.when(j == pl.num_programs(1) - 1)
    def _():
        s = jnp.sum(acc_ref[...], keepdims=True)             # (1, 1)
        psum_ref[...] = s.reshape(psum_ref.shape)            # (1, 1, 1)


def _focal_loss_sum(logits_list, target_nhw, coeffs, *, max_tm=_MAX_LANE_TILE):
    """Returns (sum over pixels of sum_k coeffs[k]*focal_k, num_pixels)."""
    n, c, h, w = logits_list[0].shape
    hw = h * w
    # Lane tile: full HW if it fits (block == full dim is always legal),
    # otherwise a large multiple of 128 with a masked tail.
    tm = hw if hw <= max_tm else max_tm
    n_tiles = pl.cdiv(hw, tm)

    # Free reshapes only -- no transpose, logits stay HW-minor (lane dense).
    logits3 = [x.reshape(n, c, hw) for x in logits_list]
    tgt3 = target_nhw.reshape(n, 1, hw).astype(jnp.int32)

    kernel = functools.partial(
        _focal_sum_kernel, hw=hw, tm=tm,
        coeffs=tuple(float(cf) for cf in coeffs))

    logits_spec = pl.BlockSpec((1, c, tm), lambda b, j: (b, 0, j))
    tgt_spec = pl.BlockSpec((1, 1, tm), lambda b, j: (b, 0, j))

    partials = pl.pallas_call(
        kernel,
        out_shape=jax.ShapeDtypeStruct((n, 1, 1), jnp.float32),
        grid_spec=pltpu.PrefetchScalarGridSpec(
            num_scalar_prefetch=0,
            grid=(n, n_tiles),
            in_specs=[logits_spec] * len(logits3) + [tgt_spec],
            out_specs=pl.BlockSpec((1, 1, 1), lambda b, j: (b, 0, 0)),
            scratch_shapes=[pltpu.VMEM((1, tm), jnp.float32)],
        ),
        compiler_params=pltpu.CompilerParams(
            dimension_semantics=("parallel", "arbitrary"),
            vmem_limit_bytes=32 * 1024 * 1024,
        ),
    )(*logits3, tgt3)

    return jnp.sum(partials), n * hw


def focal_loss_pallas(logits_nchw, target_nhw, **kw):
    """FocalLoss(gamma=2, alpha=None, size_average=True) on NCHW logits."""
    total, m = _focal_loss_sum([logits_nchw], target_nhw, (1.0,), **kw)
    return total / m


def loss_forward(outputs, targets, *, model_name="resnet_ocr", k=OCR_COEFF):
    """Mirror of Loss.forward with loss='Focal'."""
    if model_name == "resnet_ocr":
        out_aux, out = outputs
        # Fused: one pallas_call reads the targets once and accumulates
        # k * focal(out_aux) + focal(out); the mean is a scalar divide.
        total, m = _focal_loss_sum([out_aux, out], targets, (k, 1.0))
        return total / m
    return focal_loss_pallas(outputs, targets)


def _focal_ref(logits_nchw, target_nhw):
    """Pure-JAX reference for correctness checking."""
    n, c, h, w = logits_nchw.shape
    x = jnp.transpose(logits_nchw, (0, 2, 3, 1)).reshape(-1, c).astype(jnp.float32)
    t = target_nhw.reshape(-1).astype(jnp.int32)
    logsm = jax.nn.log_softmax(x, axis=-1)
    logpt = jnp.take_along_axis(logsm, t[:, None], axis=1)[:, 0]
    pt = jnp.exp(logpt)
    return jnp.mean(-1.0 * (1.0 - pt) ** GAMMA * logpt)


if __name__ == "__main__":
    key = jax.random.PRNGKey(0)
    k1, k2, k3 = jax.random.split(key, 3)

    # small segmentation-style shapes: batch=2, classes=4, spatial=16x16
    N, C, H, W = 2, 4, 16, 16
    out_aux = jax.random.normal(k1, (N, C, H, W), dtype=jnp.float32)
    out = jax.random.normal(k2, (N, C, H, W), dtype=jnp.float32)
    targets = jax.random.randint(k3, (N, H, W), 0, C, dtype=jnp.int32)

    loss = loss_forward((out_aux, out), targets)
    loss = jax.block_until_ready(loss)

    # sanity check against pure-JAX reference
    ref = OCR_COEFF * _focal_ref(out_aux, targets) + _focal_ref(out, targets)
    np.testing.assert_allclose(np.asarray(loss), np.asarray(ref), rtol=1e-5, atol=1e-6)

    print("KERNEL_OK")
</pallas_src>

<mosaic_0001>
module attributes {stable_mosaic.version = 11 : i64} {
  func.func @_focal_sum_kernel(%arg0: i32, %arg1: i32, %arg2: memref<1x4x256xf32, #tpu.memory_space<vmem>>, %arg3: memref<1x4x256xf32, #tpu.memory_space<vmem>>, %arg4: memref<1x1x256xi32, #tpu.memory_space<vmem>>, %arg5: memref<1x1x1xf32, #tpu.memory_space<vmem>>, %arg6: memref<1x256xf32, #tpu.memory_space<vmem>>) attributes {dimension_semantics = [#tpu.dimension_semantics<parallel>, #tpu.dimension_semantics<arbitrary>], iteration_bounds = array<i64: 2, 1>, scalar_prefetch = 0 : i64, scratch_operands = 1 : i64, tpu.core_type = #tpu.core_type<tc>, window_params = [{transform_indices = @transform_0, window_bounds = array<i64: 1, 4, 256>}, {transform_indices = @transform_1, window_bounds = array<i64: 1, 4, 256>}, {transform_indices = @transform_2, window_bounds = array<i64: 1, 1, 256>}, {transform_indices = @transform_3, window_bounds = array<i64: 1, 1, 1>}]} {
    %c0_i32 = arith.constant 0 : i32
    %0 = arith.cmpi eq, %arg1, %c0_i32 : i32
    %1 = arith.extui %0 : i1 to i32
    %c0_i32_0 = arith.constant 0 : i32
    %2 = arith.cmpi ne, %1, %c0_i32_0 : i32
    scf.if %2 {
      %cst_29 = arith.constant 0.000000e+00 : f32
      %70 = vector.broadcast %cst_29 : f32 to vector<1x256xf32>
      %c0_30 = arith.constant 0 : index
      %c0_31 = arith.constant 0 : index
      %71 = vector.load %arg6[%c0_30, %c0_31] : memref<1x256xf32, #tpu.memory_space<vmem>>, vector<1x256xf32>
      tpu.vector_store %arg6[%c0_30, %c0_31], %70 {strides = array<i32>} : memref<1x256xf32, #tpu.memory_space<vmem>>, vector<1x256xf32>,
    } else {
    }
    %c0 = arith.constant 0 : index
    %c0_1 = arith.constant 0 : index
    %c0_2 = arith.constant 0 : index
    %3 = vector.load %arg4[%c0, %c0_1, %c0_2] : memref<1x1x256xi32, #tpu.memory_space<vmem>>, vector<1x1x256xi32>
    %4 = vector.shape_cast %3 : vector<1x1x256xi32> to vector<1x256xi32>
    %cst = arith.constant 0.000000e+00 : f32
    %5 = vector.broadcast %cst : f32 to vector<1x256xf32>
    %c0_3 = arith.constant 0 : index
    %c0_4 = arith.constant 0 : index
    %c0_5 = arith.constant 0 : index
    %6 = vector.load %arg2[%c0_3, %c0_4, %c0_5] : memref<1x4x256xf32, #tpu.memory_space<vmem>>, vector<1x4x256xf32>
    %7 = vector.shape_cast %6 : vector<1x4x256xf32> to vector<4x256xf32>
    %cst_6 = arith.constant dense<0xFF800000> : vector<256xf32>
    %8 = vector.multi_reduction <maximumf>, %7, %cst_6 [0] : vector<4x256xf32> to vector<256xf32>
    %9 = vector.shape_cast %8 : vector<256xf32> to vector<1x256xf32>
    %10 = vector.broadcast %9 : vector<1x256xf32> to vector<4x256xf32>
    %11 = arith.subf %7, %10 : vector<4x256xf32>
    %12 = math.exp %11 : vector<4x256xf32>
    %cst_7 = arith.constant dense<0.000000e+00> : vector<256xf32>
    %13 = vector.multi_reduction <add>, %12, %cst_7 [0] : vector<4x256xf32> to vector<256xf32>
    %14 = vector.shape_cast %13 : vector<256xf32> to vector<1x256xf32>
    %15 = math.log %14 : vector<1x256xf32>
    %16 = vector.broadcast %15 : vector<1x256xf32> to vector<4x256xf32>
    %17 = arith.subf %11, %16 : vector<4x256xf32>
    %18 = tpu.iota {dimensions = array<i32: 0>} : vector<4x256xi32>
    %19 = vector.broadcast %4 : vector<1x256xi32> to vector<4x256xi32>
    %20 = arith.cmpi eq, %18, %19 : vector<4x256xi32>
    %cst_8 = arith.constant 0.000000e+00 : f32
    %21 = vector.broadcast %cst_8 : f32 to vector<4x256xf32>
    %22 = arith.select %20, %17, %21 : vector<4x256xi1>, vector<4x256xf32>
    %cst_9 = arith.constant dense<0.000000e+00> : vector<256xf32>
    %23 = vector.multi_reduction <add>, %22, %cst_9 [0] : vector<4x256xf32> to vector<256xf32>
    %24 = vector.shape_cast %23 : vector<256xf32> to vector<1x256xf32>
    %25 = math.exp %24 : vector<1x256xf32>
    %cst_10 = arith.constant 1.000000e+00 : f32
    %26 = vector.broadcast %cst_10 : f32 to vector<1x256xf32>
    %27 = arith.subf %26, %25 : vector<1x256xf32>
    %28 = arith.mulf %27, %27 : vector<1x256xf32>
    %cst_11 = arith.constant 0.000000e+00 : f32
    %29 = vector.broadcast %cst_11 : f32 to vector<1x256xf32>
    %30 = arith.subf %29, %28 : vector<1x256xf32>
    %31 = arith.mulf %30, %24 : vector<1x256xf32>
    %cst_12 = arith.constant 4.000000e-01 : f32
    %32 = vector.broadcast %cst_12 : f32 to vector<1x256xf32>
    %33 = arith.mulf %32, %31 : vector<1x256xf32>
    %34 = arith.addf %5, %33 : vector<1x256xf32>
    %c0_13 = arith.constant 0 : index
    %c0_14 = arith.constant 0 : index
    %c0_15 = arith.constant 0 : index
    %35 = vector.load %arg3[%c0_13, %c0_14, %c0_15] : memref<1x4x256xf32, #tpu.memory_space<vmem>>, vector<1x4x256xf32>
    %36 = vector.shape_cast %35 : vector<1x4x256xf32> to vector<4x256xf32>
    %cst_16 = arith.constant dense<0xFF800000> : vector<256xf32>
    %37 = vector.multi_reduction <maximumf>, %36, %cst_16 [0] : vector<4x256xf32> to vector<256xf32>
    %38 = vector.shape_cast %37 : vector<256xf32> to vector<1x256xf32>
    %39 = vector.broadcast %38 : vector<1x256xf32> to vector<4x256xf32>
    %40 = arith.subf %36, %39 : vector<4x256xf32>
    %41 = math.exp %40 : vector<4x256xf32>
    %cst_17 = arith.constant dense<0.000000e+00> : vector<256xf32>
    %42 = vector.multi_reduction <add>, %41, %cst_17 [0] : vector<4x256xf32> to vector<256xf32>
    %43 = vector.shape_cast %42 : vector<256xf32> to vector<1x256xf32>
    %44 = math.log %43 : vector<1x256xf32>
    %45 = vector.broadcast %44 : vector<1x256xf32> to vector<4x256xf32>
    %46 = arith.subf %40, %45 : vector<4x256xf32>
    %47 = tpu.iota {dimensions = array<i32: 0>} : vector<4x256xi32>
    %48 = vector.broadcast %4 : vector<1x256xi32> to vector<4x256xi32>
    %49 = arith.cmpi eq, %47, %48 : vector<4x256xi32>
    %cst_18 = arith.constant 0.000000e+00 : f32
    %50 = vector.broadcast %cst_18 : f32 to vector<4x256xf32>
    %51 = arith.select %49, %46, %50 : vector<4x256xi1>, vector<4x256xf32>
    %cst_19 = arith.constant dense<0.000000e+00> : vector<256xf32>
    %52 = vector.multi_reduction <add>, %51, %cst_19 [0] : vector<4x256xf32> to vector<256xf32>
    %53 = vector.shape_cast %52 : vector<256xf32> to vector<1x256xf32>
    %54 = math.exp %53 : vector<1x256xf32>
    %cst_20 = arith.constant 1.000000e+00 : f32
    %55 = vector.broadcast %cst_20 : f32 to vector<1x256xf32>
    %56 = arith.subf %55, %54 : vector<1x256xf32>
    %57 = arith.mulf %56, %56 : vector<1x256xf32>
    %cst_21 = arith.constant 0.000000e+00 : f32
    %58 = vector.broadcast %cst_21 : f32 to vector<1x256xf32>
    %59 = arith.subf %58, %57 : vector<1x256xf32>
    %60 = arith.mulf %59, %53 : vector<1x256xf32>
    %cst_22 = arith.constant 1.000000e+00 : f32
    %61 = vector.broadcast %cst_22 : f32 to vector<1x256xf32>
    %62 = arith.mulf %61, %60 : vector<1x256xf32>
    %63 = arith.addf %34, %62 : vector<1x256xf32>
    %c0_23 = arith.constant 0 : index
    %c0_24 = arith.constant 0 : index
    %64 = vector.load %arg6[%c0_23, %c0_24] : memref<1x256xf32, #tpu.memory_space<vmem>>, vector<1x256xf32>
    %65 = arith.addf %64, %63 : vector<1x256xf32>
    %c0_25 = arith.constant 0 : index
    %c0_26 = arith.constant 0 : index
    %66 = vector.load %arg6[%c0_25, %c0_26] : memref<1x256xf32, #tpu.memory_space<vmem>>, vector<1x256xf32>
    tpu.vector_store %arg6[%c0_25, %c0_26], %65 {strides = array<i32>} : memref<1x256xf32, #tpu.memory_space<vmem>>, vector<1x256xf32>,
    %c0_i32_27 = arith.constant 0 : i32
    %67 = arith.cmpi eq, %arg1, %c0_i32_27 : i32
    %68 = arith.extui %67 : i1 to i32
    %c0_i32_28 = arith.constant 0 : i32
    %69 = arith.cmpi ne, %68, %c0_i32_28 : i32
    scf.if %69 {
      %c0_29 = arith.constant 0 : index
      %c0_30 = arith.constant 0 : index
      %70 = vector.load %arg6[%c0_29, %c0_30] : memref<1x256xf32, #tpu.memory_space<vmem>>, vector<1x256xf32>
      %71 = vector.shape_cast %70 : vector<1x256xf32> to vector<1x1x256xf32>
      %cst_31 = arith.constant dense<0.000000e+00> : vector<1xf32>
      %72 = vector.multi_reduction <add>, %71, %cst_31 [1, 2] : vector<1x1x256xf32> to vector<1xf32>
      %73 = vector.shape_cast %72 : vector<1xf32> to vector<1x1x1xf32>
      %74 = vector.extract %73[0, 0, 0] : f32 from vector<1x1x1xf32>
      %75 = vector.broadcast %74 : f32 to vector<1x1xf32>
      %76 = vector.shape_cast %75 : vector<1x1xf32> to vector<1x1x1xf32>
      %c0_32 = arith.constant 0 : index
      %c0_33 = arith.constant 0 : index
      %c0_34 = arith.constant 0 : index
      %77 = vector.load %arg5[%c0_32, %c0_33, %c0_34] : memref<1x1x1xf32, #tpu.memory_space<vmem>>, vector<1x1x1xf32>
      tpu.vector_store %arg5[%c0_32, %c0_33, %c0_34], %76 {strides = array<i32>} : memref<1x1x1xf32, #tpu.memory_space<vmem>>, vector<1x1x1xf32>,
    } else {
    }
    return
  }
  func.func @transform_0(%arg0: i32, %arg1: i32) -> (i32, i32, i32) {
    %c0_i32 = arith.constant 0 : i32
    %c0_i32_0 = arith.constant 0 : i32
    return %arg0, %c0_i32, %arg1 : i32, i32, i32
  }
  func.func @transform_1(%arg0: i32, %arg1: i32) -> (i32, i32, i32) {
    %c0_i32 = arith.constant 0 : i32
    %c0_i32_0 = arith.constant 0 : i32
    return %arg0, %c0_i32, %arg1 : i32, i32, i32
  }
  func.func @transform_2(%arg0: i32, %arg1: i32) -> (i32, i32, i32) {
    %c0_i32 = arith.constant 0 : i32
    %c0_i32_0 = arith.constant 0 : i32
    return %arg0, %c0_i32, %arg1 : i32, i32, i32
  }
  func.func @transform_3(%arg0: i32, %arg1: i32) -> (i32, i32, i32) {
    %c0_i32 = arith.constant 0 : i32
    %c0_i32_0 = arith.constant 0 : i32
    %c0_i32_1 = arith.constant 0 : i32
    return %arg0, %c0_i32, %c0_i32_0 : i32, i32, i32
  }
}

</mosaic_0001>

<llo_original>
// kernel: tpu_custom_call.1
$region0: #{tpu_custom_call.1}
  #allocation0 [shape = 'u32[]', space=smem, size = 0x4, offset = 0x4, fixed_abs, tag = 'smem constant byte address 0x4 - core index']
  #allocation1 [shape = 'u32[144,128]{1,0:T(1,128)}', space=vmem, size = 0x12000, scoped, tag = 'internal scratch']
  #allocation2 [shape = 'f32[1,256]{1,0:T(1,128)}', space=vmem, size = 0x400, scoped, tag = 'scratch operand']
  %s0 = inlined_call_operand.hbm [shape: f32[2,4,256], index: 0, kind: input, shape index: {}]
  %s1 = inlined_call_operand.hbm [shape: f32[2,4,256], index: 1, kind: input, shape index: {}]
  %s2 = inlined_call_operand.vmem [shape: s32[2,1,256], index: 2, kind: input, shape index: {}]
  %s3 = inlined_call_operand.vmem [shape: f32[2,1,1], index: 3, kind: output, shape index: {}]
  %s4 = sld [smem:[#allocation0]]
  $region61: #{tpu_custom_call.1} parent=0
    _
  %s6 = ssub.s32 1, %s4
  %s7 = scalar_select 0, %s6, %s4
  $region1: #{tpu_custom_call.1} parent=0
    #allocation3 [shape = 'u8[8192]{0}', space=vmem, size = 0x2000, scoped, tag = 'input window, operand 0']
    #allocation4 [shape = 's32[2]{0}', space=sflag, size = 0x8, scoped, tag = 'scoped memory for tpu_custom_call.1']
    #allocation5 [shape = 'u8[8192]{0}', space=vmem, size = 0x2000, scoped, tag = 'input window, operand 1']
    #allocation6 [shape = 's32[2]{0}', space=sflag, size = 0x8, scoped, tag = 'scoped memory for tpu_custom_call.1']
    %8 = vsyncpa [#allocation4], 0
    %s9 = scalar_lea.sflag [#allocation4], 1
    %10 = vsyncpa %s9, 0
    %11 = vsyncpa [#allocation6], 0
    %s12 = scalar_lea.sflag [#allocation6], 1
    %13 = vsyncpa %s12, 0
    loop: start=0, step=1, limit=4
    $region2: #{tpu_custom_call.1} parent=1 // loop_pre_header
      _
    $region3: #{tpu_custom_call.1} parent=1 // loop_header
      %s15 = sphi 0, %s19
      %p16 = scmp.ge.s32.totalorder %s15, 4
      %s22 = sphi 0, %s34
      %s23 = sphi 0, %s30
      %s24 = sphi 0, %s22
      %s25 = sphi 0, %s23
      %s26 = sphi 0, %s24
      %s27 = sphi 0, %s25
      %s39 = sphi 0, %s41
      %s42 = sphi 0, %s39
      %s43 = sphi 0, %s42
      %s59 = sphi 0, %s43
      %s67 = sphi 0, %s69
      %s70 = sphi 0, %s67
      %s71 = sphi 0, %s70
      %s87 = sphi 0, %s71
      %s95 = sphi 0, %s97
      %s98 = sphi 0, %s95
      %s99 = sphi 0, %s98
      %s115 = sphi 0, %s99
      %s121 = sphi 0, %s123
      %s124 = sphi 0, %s121
      %s125 = sphi 0, %s124
      %s141 = sphi 0, %s125
    $region4: #{tpu_custom_call.1} parent=1 // loop_header_branch
      %18 = sbr.rel (%p16) target = $region8
    $region5: #{tpu_custom_call.1} parent=1 // loop_body
      %s20 = ssub.s32 %s15, 1
      %s21 = ssub.s32 %s15, 2
      %s28 = sadd.s32 1, %s23
      %p29 = scmp.ge.s32.totalorder %s28, 1
      %s30 = scalar_select %p29, 0, %s28
      %s31 = sadd.s32 1, %s22
      %s32 = scalar_select %p29, %s31, %s22
      %p33 = scmp.ge.s32.totalorder %s32, 2
      %s34 = scalar_select %p33, 0, %s32
      %s35 = ssub.s32 %s22, %s34
      %s36 = ssub.s32 %s23, %s30
      %s37 = sor.u32 %s35, %s36
      %p38 = scmp.eq.s32.totalorder %s37, 0
      %s40 = sadd.s32 %s39, 1
      %s41 = scalar_select %p38, %s39, %s40
      %p44 = pneg %p38
      %p45 = scmp.eq.s32.totalorder %s15, 1
      %p46 = por %p44, %p45
      %p47 = scmp.ne.s32.totalorder %s39, %s42
      %p48 = scmp.eq.s32.totalorder %s15, 0
      %p49 = por %p47, %p48
      %p50 = scmp.ne.s32.totalorder %s39, %s42
      %p51 = scmp.eq.s32.totalorder %s20, 1
      %p52 = por %p50, %p51
      %p53 = scmp.ne.s32.totalorder %s42, %s43
      %p54 = scmp.eq.s32.totalorder %s20, 0
      %p55 = por %p53, %p54
      %p56 = scmp.ne.s32.totalorder %s42, %s43
      %p57 = scmp.eq.s32.totalorder %s21, 1
      %p58 = por %p56, %p57
      %p60 = scmp.ne.s32.totalorder %s43, %s59
      %p61 = scmp.eq.s32.totalorder %s21, 0
      %p62 = por %p60, %p61
      %s63 = ssub.s32 %s22, %s34
      %s64 = ssub.s32 %s23, %s30
      %s65 = sor.u32 %s63, %s64
      %p66 = scmp.eq.s32.totalorder %s65, 0
      %s68 = sadd.s32 %s67, 1
      %s69 = scalar_select %p66, %s67, %s68
      %p72 = pneg %p66
      %p73 = scmp.eq.s32.totalorder %s15, 1
      %p74 = por %p72, %p73
      %p75 = scmp.ne.s32.totalorder %s67, %s70
      %p76 = scmp.eq.s32.totalorder %s15, 0
      %p77 = por %p75, %p76
      %p78 = scmp.ne.s32.totalorder %s67, %s70
      %p79 = scmp.eq.s32.totalorder %s20, 1
      %p80 = por %p78, %p79
      %p81 = scmp.ne.s32.totalorder %s70, %s71
      %p82 = scmp.eq.s32.totalorder %s20, 0
      %p83 = por %p81, %p82
      %p84 = scmp.ne.s32.totalorder %s70, %s71
      %p85 = scmp.eq.s32.totalorder %s21, 1
      %p86 = por %p84, %p85
      %p88 = scmp.ne.s32.totalorder %s71, %s87
      %p89 = scmp.eq.s32.totalorder %s21, 0
      %p90 = por %p88, %p89
      %s91 = ssub.s32 %s22, %s34
      %s92 = ssub.s32 %s23, %s30
      %s93 = sor.u32 %s91, %s92
      %p94 = scmp.eq.s32.totalorder %s93, 0
      %s96 = sadd.s32 %s95, 1
      %s97 = scalar_select %p94, %s95, %s96
      %p100 = pneg %p94
      %p101 = scmp.eq.s32.totalorder %s15, 1
      %p102 = por %p100, %p101
      %p103 = scmp.ne.s32.totalorder %s95, %s98
      %p104 = scmp.eq.s32.totalorder %s15, 0
      %p105 = por %p103, %p104
      %p106 = scmp.ne.s32.totalorder %s95, %s98
      %p107 = scmp.eq.s32.totalorder %s20, 1
      %p108 = por %p106, %p107
      %p109 = scmp.ne.s32.totalorder %s98, %s99
      %p110 = scmp.eq.s32.totalorder %s20, 0
      %p111 = por %p109, %p110
      %p112 = scmp.ne.s32.totalorder %s98, %s99
      %p113 = scmp.eq.s32.totalorder %s21, 1
      %p114 = por %p112, %p113
      %p116 = scmp.ne.s32.totalorder %s99, %s115
      %p117 = scmp.eq.s32.totalorder %s21, 0
      %p118 = por %p116, %p117
      %s119 = ssub.s32 %s22, %s34
      %p120 = scmp.eq.s32.totalorder %s119, 0
      %s122 = sadd.s32 %s121, 1
      %s123 = scalar_select %p120, %s121, %s122
      %p126 = pneg %p120
      %p127 = scmp.eq.s32.totalorder %s15, 1
      %p128 = por %p126, %p127
      %p129 = scmp.ne.s32.totalorder %s121, %s124
      %p130 = scmp.eq.s32.totalorder %s15, 0
      %p131 = por %p129, %p130
      %p132 = scmp.ne.s32.totalorder %s121, %s124
      %p133 = scmp.eq.s32.totalorder %s20, 1
      %p134 = por %p132, %p133
      %p135 = scmp.ne.s32.totalorder %s124, %s125
      %p136 = scmp.eq.s32.totalorder %s20, 0
      %p137 = por %p135, %p136
      %p138 = scmp.ne.s32.totalorder %s124, %s125
      %p139 = scmp.eq.s32.totalorder %s21, 1
      %p140 = por %p138, %p139
      %p142 = scmp.ne.s32.totalorder %s125, %s141
      %p143 = scmp.eq.s32.totalorder %s21, 0
      %p144 = por %p142, %p143
      %p145 = scmp.le.s32.totalorder 1, %s15
      %p146 = scmp.lt.s32.totalorder %s15, 3
      %p147 = pnand %p145, %p146
      %p148 = pneg %p147
      // Predicated region
      $region9: #{tpu_custom_call.1} parent=5 // pred_check
        _
      $region10: #{tpu_custom_call.1} parent=5 // pred_check_branch
        %150 = sbr.rel (%p147) target = $region12
      $region11: #{tpu_custom_call.1} parent=5 // pred_region
        %s151 = ssub.s32 %s15, 1
      $region12: #{tpu_custom_call.1} parent=5 // pred_fallthru
        _
      %p152 = scmp.lt.s32.totalorder %s15, 2
      // Predicated region
      $region13: #{tpu_custom_call.1} parent=5 // pred_check
        %p153 = pneg %p152
      $region14: #{tpu_custom_call.1} parent=5 // pred_check_branch
        %155 = sbr.rel (%p153) target = $region16
      $region15: #{tpu_custom_call.1} parent=5 // pred_region
        // Predicated region
        $region17: #{tpu_custom_call.1} parent=15 // pred_check
          %p156 = pneg %p49
        $region18: #{tpu_custom_call.1} parent=15 // pred_check_branch
          %158 = sbr.rel (%p156) target = $region20
        $region19: #{tpu_custom_call.1} parent=15 // pred_region
          %s159 = sand.u32 %s39, 1
          %s160 = scalar_lea.sflag [#allocation4], %s159
          %s161 = sand.u32 %s39, 1
          %s162 = smul.addr %s161, 8
          %s163 = scalar_lea.vmem [#allocation3], %s162
          %s164 = smul.u32 2, %s23
          %s166 = ssub.s32 128, 128
          %167 = vsyncadd %s160, %s166
          %s168 = smul.addr %s22, 2
          %s169 = sadd.s32 %s164, %s168
          %s170 = smul.addr %s169, 64
          %s171 = scalar_lea.hbm %s0, %s170
          %s173 = sshll.u32 %s163, 4
          %s174 = int_to_ptr.vmem [resolvable:$true] %s173
          %176 = dma.hbm_to_vmem [thread:$0]  %s171, 128, %s174, %s160
        $region20: #{tpu_custom_call.1} parent=15 // pred_fallthru
          _
        // Predicated region
        $region21: #{tpu_custom_call.1} parent=15 // pred_check
          %p177 = pneg %p77
        $region22: #{tpu_custom_call.1} parent=15 // pred_check_branch
          %179 = sbr.rel (%p177) target = $region24
        $region23: #{tpu_custom_call.1} parent=15 // pred_region
          %s180 = sand.u32 %s67, 1
          %s181 = scalar_lea.sflag [#allocation6], %s180
          %s182 = sand.u32 %s67, 1
          %s183 = smul.addr %s182, 8
          %s184 = scalar_lea.vmem [#allocation5], %s183
          %s185 = smul.u32 2, %s23
          %s187 = ssub.s32 128, 128
          %188 = vsyncadd %s181, %s187
          %s189 = smul.addr %s22, 2
          %s190 = sadd.s32 %s185, %s189
          %s191 = smul.addr %s190, 64
          %s192 = scalar_lea.hbm %s1, %s191
          %s194 = sshll.u32 %s184, 4
          %s195 = int_to_ptr.vmem [resolvable:$true] %s194
          %197 = dma.hbm_to_vmem [thread:$0]  %s192, 128, %s195, %s181
        $region24: #{tpu_custom_call.1} parent=15 // pred_fallthru
          _
        // Predicated region
        $region25: #{tpu_custom_call.1} parent=15 // pred_check
          %p198 = pneg %p105
        $region26: #{tpu_custom_call.1} parent=15 // pred_check_branch
          %200 = sbr.rel (%p198) target = $region28
        $region27: #{tpu_custom_call.1} parent=15 // pred_region
          %s201 = smul.u32 2, %s23
          %p202 = scmp.lt.s32.totalorder %s22, 1
          %s203 = scalar_select %p202, %s22, 1
          %p204 = scmp.lt.s32.totalorder %s201, 1
          %s205 = scalar_select %p204, %s201, 1
          %s206 = smul.addr %s203, 2
          %s207 = sadd.s32 %s205, %s206
          %s208 = scalar_lea.vmem %s2, %s207
          %s209 = smul.u32 2, %s23
        $region28: #{tpu_custom_call.1} parent=15 // pred_fallthru
          _
      $region16: #{tpu_custom_call.1} parent=5 // pred_fallthru
        _
      %p210 = scmp.le.s32.totalorder 1, %s15
      %p211 = scmp.lt.s32.totalorder %s15, 3
      %p212 = pnand %p210, %p211
      %p213 = pneg %p212
      // Predicated region
      $region29: #{tpu_custom_call.1} parent=5 // pred_check
        _
      $region30: #{tpu_custom_call.1} parent=5 // pred_check_branch
        %215 = sbr.rel (%p212) target = $region32
      $region31: #{tpu_custom_call.1} parent=5 // pred_region
        %s216 = ssub.s32 %s15, 1
        %s217 = sand.u32 %s42, 1
        %s218 = scalar_lea.sflag [#allocation4], %s217
        %s219 = sand.u32 %s42, 1
        %s220 = smul.addr %s219, 8
        %s221 = scalar_lea.vmem [#allocation3], %s220
        // Predicated region
        $region33: #{tpu_custom_call.1} parent=31 // pred_check
          %p222 = pneg %p55
        $region34: #{tpu_custom_call.1} parent=31 // pred_check_branch
          %224 = sbr.rel (%p222) target = $region36
        $region35: #{tpu_custom_call.1} parent=31 // pred_region
          %225 = dma.done %s218, 128
        $region36: #{tpu_custom_call.1} parent=31 // pred_fallthru
          _
        %s226 = sand.u32 %s70, 1
        %s227 = scalar_lea.sflag [#allocation6], %s226
        %s228 = sand.u32 %s70, 1
        %s229 = smul.addr %s228, 8
        %s230 = scalar_lea.vmem [#allocation5], %s229
        // Predicated region
        $region37: #{tpu_custom_call.1} parent=31 // pred_check
          %p231 = pneg %p83
        $region38: #{tpu_custom_call.1} parent=31 // pred_check_branch
          %233 = sbr.rel (%p231) target = $region40
        $region39: #{tpu_custom_call.1} parent=31 // pred_region
          %234 = dma.done %s227, 128
        $region40: #{tpu_custom_call.1} parent=31 // pred_fallthru
          _
        %s235 = sand.u32 %s42, 1
        %s236 = scalar_lea.sflag [#allocation4], %s235
        %s237 = sand.u32 %s42, 1
        %s238 = smul.addr %s237, 8
        %s239 = scalar_lea.vmem [#allocation3], %s238
        %p240 = pneg %p55
        %p241 = pneg %p52
        %s242 = sand.u32 %s70, 1
        %s243 = scalar_lea.sflag [#allocation6], %s242
        %s244 = sand.u32 %s70, 1
        %s245 = smul.addr %s244, 8
        %s246 = scalar_lea.vmem [#allocation5], %s245
        %p247 = pneg %p83
        %p248 = pneg %p80
        %s249 = smul.u32 2, %s25
        %p250 = scmp.lt.s32.totalorder %s24, 1
        %s251 = scalar_select %p250, %s24, 1
        %p252 = scmp.lt.s32.totalorder %s249, 1
        %s253 = scalar_select %p252, %s249, 1
        %s254 = smul.addr %s251, 2
        %s255 = sadd.s32 %s253, %s254
        %s256 = scalar_lea.vmem %s2, %s255
        %p257 = pneg %p111
        %p258 = pneg %p108
        %p259 = pneg %p137
        %p260 = pneg %p134
        %p261 = scmp.lt.s32.totalorder %s24, 1
        %s262 = scalar_select %p261, %s24, 1
        %s263 = scalar_lea.vmem %s3, %s262
        %s264 = smul.u32 2, %s25
        %s265 = smul.u32 2, %s25
        %s266 = smul.u32 2, %s25
        %p267 = scmp.lt.s32.totalorder %s24, 1
        %s268 = scalar_select %p267, %s24, 1
        %p269 = scmp.lt.s32.totalorder %s266, 1
        %s270 = scalar_select %p269, %s266, 1
        %s271 = smul.addr %s268, 2
        %s272 = sadd.s32 %s270, %s271
        %s273 = scalar_lea.vmem %s2, %s272
        %s274 = smul.u32 2, %s25
        %p275 = scmp.lt.s32.totalorder %s24, 1
        %s276 = scalar_select %p275, %s24, 1
        %s277 = scalar_lea.vmem %s3, %s276
        %p278 = scmp.eq.s32.totalorder %s25, 0
        // Predicated region
        $region41: #{tpu_custom_call.1} parent=31 // pred_check
          %p279 = pneg %p278
        $region42: #{tpu_custom_call.1} parent=31 // pred_check_branch
          %281 = sbr.rel (%p279) target = $region44
        $region43: #{tpu_custom_call.1} parent=31 // pred_region
          %v282 = vlaneseq
          %vm283 = vcmp.ge.s32.totalorder %v282, 0
          %vm284 = vcmp.lt.s32.totalorder %v282, 256
          %vm285 = vmand %vm283, %vm284
          %286 = vst.msk [vmem:[#allocation2] sm:$0x3] %vm285, 0.0
        $region44: #{tpu_custom_call.1} parent=31 // pred_fallthru
          _
        %v287 = vld [vmem:[%s273] sm:$0x3]
        %v288 = vld [vmem:[%s221] sm:$0xff]
        %v290 = vcombine.high %v288, %v288
        %vm292 = vcmask 1043456
        %v293 = vsel %vm292, %v288, -inf
        %v294 = vrot.slane %v293, 4
        %v295 = vmax.f32 %v293, %v294
        %v296 = vrot.slane %v295, 2
        %v297 = vmax.f32 %v295, %v296
        %v298 = vrot.slane %v297, 1
        %v299 = vmax.f32 %v297, %v298
        %v300 = vsel %vm292, %v290, -inf
        %v301 = vrot.slane %v300, 4
        %v302 = vmax.f32 %v300, %v301
        %v303 = vrot.slane %v302, 2
        %v304 = vmax.f32 %v302, %v303
        %v305 = vrot.slane %v304, 1
        %v306 = vmax.f32 %v304, %v305
        %v309 = vcombine.low %v299, %v306
        %v311 = vsub.f32 %v288, %v309
        %v312 = vmul.f32 %v311, 1.442695
        %v313 = vpow.pop %v312
        %v315 = vcombine.high %v313, %v313
        %v317 = vsel %vm292, %v313, 0.0
        %v318 = vrot.slane %v317, 4
        %v319 = vadd.f32 %v317, %v318
        %v320 = vrot.slane %v319, 2
        %v321 = vadd.f32 %v319, %v320
        %v322 = vrot.slane %v321, 1
        %v323 = vadd.f32 %v321, %v322
        %v324 = vsel %vm292, %v315, 0.0
        %v325 = vrot.slane %v324, 4
        %v326 = vadd.f32 %v324, %v325
        %v327 = vrot.slane %v326, 2
        %v328 = vadd.f32 %v326, %v327
        %v329 = vrot.slane %v328, 1
        %v330 = vadd.f32 %v328, %v329
        %v331 = vlog2.pop %v323
        %v332 = vmul.f32 %v331, 0.6931472
        %v333 = vlog2.pop %v330
        %v334 = vmul.f32 %v333, 0.6931472
        %v337 = vcombine.low %v332, %v334
        %v339 = vsub.f32 %v311, %v337
        %v340 = vlaneseq
        %v341 = vshrl.u32 %v340, 7
        %v342 = vlaneseq
        %v343 = vshrl.u32 %v342, 7
        %v344 = vsub.s32 0, %v343
        %v345 = vrot.slane %v287, %v344
        %v346 = vlaneseq
        %v347 = vshrl.u32 %v346, 7
        %v348 = vsub.s32 1, %v347
        %v349 = vrot.slane %v287, %v348
        %vm350 = vcmp.eq.s32.totalorder %v341, %v345
        %vm351 = vcmp.eq.s32.totalorder %v341, %v349
        %v353 = vcombine.high %v339, %v339
        %v355 = vsel %vm350, %v339, 0.0
        %v356 = vsel %vm351, %v353, 0.0
        %v357 = vsel %vm292, %v355, 0.0
        %v358 = vrot.slane %v357, 4
        %v359 = vadd.f32 %v357, %v358
        %v360 = vrot.slane %v359, 2
        %v361 = vadd.f32 %v359, %v360
        %v362 = vrot.slane %v361, 1
        %v363 = vadd.f32 %v361, %v362
        %v364 = vsel %vm292, %v356, 0.0
        %v365 = vrot.slane %v364, 4
        %v366 = vadd.f32 %v364, %v365
        %v367 = vrot.slane %v366, 2
        %v368 = vadd.f32 %v366, %v367
        %v369 = vrot.slane %v368, 1
        %v370 = vadd.f32 %v368, %v369
        %v371 = vmul.f32 %v363, 1.442695
        %v372 = vpow.pop %v371
        %v373 = vmul.f32 %v370, 1.442695
        %v374 = vpow.pop %v373
        %v375 = vsub.f32 1.0, %v372
        %v376 = vsub.f32 1.0, %v374
        %v377 = vmul.f32 %v375, %v375
        %v378 = vmul.f32 %v376, %v376
        %v379 = vsub.f32 0.0, %v377
        %v380 = vsub.f32 0.0, %v378
        %v381 = vmul.f32 %v379, %v363
        %v382 = vmul.f32 %v380, %v370
        %v383 = vmul.f32 %v381, 0.4
        %v384 = vmul.f32 %v382, 0.4
        %v385 = vadd.f32 %v383, 0.0
        %v386 = vadd.f32 %v384, 0.0
        %v387 = vld [vmem:[%s230] sm:$0xff]
        %v389 = vcombine.high %v387, %v387
        %v391 = vsel %vm292, %v387, -inf
        %v392 = vrot.slane %v391, 4
        %v393 = vmax.f32 %v391, %v392
        %v394 = vrot.slane %v393, 2
        %v395 = vmax.f32 %v393, %v394
        %v396 = vrot.slane %v395, 1
        %v397 = vmax.f32 %v395, %v396
        %v398 = vsel %vm292, %v389, -inf
        %v399 = vrot.slane %v398, 4
        %v400 = vmax.f32 %v398, %v399
        %v401 = vrot.slane %v400, 2
        %v402 = vmax.f32 %v400, %v401
        %v403 = vrot.slane %v402, 1
        %v404 = vmax.f32 %v402, %v403
        %v407 = vcombine.low %v397, %v404
        %v409 = vsub.f32 %v387, %v407
        %v410 = vmul.f32 %v409, 1.442695
        %v411 = vpow.pop %v410
        %v413 = vcombine.high %v411, %v411
        %v415 = vsel %vm292, %v411, 0.0
        %v416 = vrot.slane %v415, 4
        %v417 = vadd.f32 %v415, %v416
        %v418 = vrot.slane %v417, 2
        %v419 = vadd.f32 %v417, %v418
        %v420 = vrot.slane %v419, 1
        %v421 = vadd.f32 %v419, %v420
        %v422 = vsel %vm292, %v413, 0.0
        %v423 = vrot.slane %v422, 4
        %v424 = vadd.f32 %v422, %v423
        %v425 = vrot.slane %v424, 2
        %v426 = vadd.f32 %v424, %v425
        %v427 = vrot.slane %v426, 1
        %v428 = vadd.f32 %v426, %v427
        %v429 = vlog2.pop %v421
        %v430 = vmul.f32 %v429, 0.6931472
        %v431 = vlog2.pop %v428
        %v432 = vmul.f32 %v431, 0.6931472
        %v435 = vcombine.low %v430, %v432
        %v437 = vsub.f32 %v409, %v435
        %v439 = vcombine.high %v437, %v437
        %v441 = vsel %vm350, %v437, 0.0
        %v442 = vsel %vm351, %v439, 0.0
        %v443 = vsel %vm292, %v441, 0.0
        %v444 = vrot.slane %v443, 4
        %v445 = vadd.f32 %v443, %v444
        %v446 = vrot.slane %v445, 2
        %v447 = vadd.f32 %v445, %v446
        %v448 = vrot.slane %v447, 1
        %v449 = vadd.f32 %v447, %v448
        %v450 = vsel %vm292, %v442, 0.0
        %v451 = vrot.slane %v450, 4
        %v452 = vadd.f32 %v450, %v451
        %v453 = vrot.slane %v452, 2
        %v454 = vadd.f32 %v452, %v453
        %v455 = vrot.slane %v454, 1
        %v456 = vadd.f32 %v454, %v455
        %v457 = vmul.f32 %v449, 1.442695
        %v458 = vpow.pop %v457
        %v459 = vmul.f32 %v456, 1.442695
        %v460 = vpow.pop %v459
        %v461 = vsub.f32 1.0, %v458
        %v462 = vsub.f32 1.0, %v460
        %v463 = vmul.f32 %v461, %v461
        %v464 = vmul.f32 %v462, %v462
        %v465 = vsub.f32 0.0, %v463
        %v466 = vsub.f32 0.0, %v464
        %v467 = vmul.f32 %v465, %v449
        %v468 = vmul.f32 %v466, %v456
        %v469 = vadd.f32 %v385, %v467
        %v470 = vadd.f32 %v386, %v468
        %v471 = vld [vmem:[#allocation2] sm:$0x3]
        %v474 = vcombine.low %v469, %v470
        %v476 = vunpack.c.l.s4 1966171168
        %v477 = vunpack.c.0.s8 %v476
        %v478 = vlaneseq
        %v479 = vshrl.u32 %v478, 7
        %v480 = vsub.s32 %v477, %v479
        %v481 = vrot.slane %v474, %v480
        %v483 = vunpack.c.l.s4 1966171168
        %v484 = vunpack.c.0.s8 %v483
        %v485 = vlaneseq
        %v486 = vshrl.u32 %v485, 7
        %v487 = vsub.s32 %v484, %v486
        %v488 = vrot.slane %v481, %v487
        %v490 = vadd.f32 %v471, %v488
        %v491 = vlaneseq
        %vm492 = vcmp.ge.s32.totalorder %v491, 0
        %vm493 = vcmp.lt.s32.totalorder %v491, 256
        %vm494 = vmand %vm492, %vm493
        %495 = vst.msk [vmem:[#allocation2] sm:$0x3] %vm494, %v490
        // Predicated region
        $region45: #{tpu_custom_call.1} parent=31 // pred_check
          %p496 = pneg %p278
        $region46: #{tpu_custom_call.1} parent=31 // pred_check_branch
          %498 = sbr.rel (%p496) target = $region48
        $region47: #{tpu_custom_call.1} parent=31 // pred_region
          %v499 = vld [vmem:[#allocation2] sm:$0x3]
          %v501 = vlaneseq
          %v502 = vshrl.u32 %v501, 7
          %v503 = vsub.s32 0, %v502
          %v504 = vrot.slane %v499, %v503
          %v505 = vlaneseq
          %v506 = vshrl.u32 %v505, 7
          %v507 = vsub.s32 1, %v506
          %v508 = vrot.slane %v499, %v507
          %vm511 = vcmask 1040384
          %v512 = vsel %vm511, %v504, 0.0
          %v513 = vsel %vm511, %v508, 0.0
          %v514 = vadd.f32 %v512, %v513
          %515 = vadd.xlane.f32.xlu0 %v514
          %v516 = vpop.xlane.xlu0 %515
          %v517 = vrot.slane %v516, 4
          %v518 = vadd.f32 %v516, %v517
          %v519 = vrot.slane %v518, 2
          %v520 = vadd.f32 %v518, %v519
          %v521 = vrot.slane %v520, 1
          %v522 = vadd.f32 %v520, %v521
          %s523 = vtos %v522
          %v524 = vstv %s523
          %vm525 = vcmask 0
          %526 = vst.msk [vmem:[%s277] sm:$0x1] %vm525, %v524
        $region48: #{tpu_custom_call.1} parent=31 // pred_fallthru
          _
        %p527 = scmp.lt.s32.totalorder %s24, 1
        %s528 = scalar_select %p527, %s24, 1
        %s529 = scalar_lea.vmem %s3, %s528
        // Predicated region
        $region49: #{tpu_custom_call.1} parent=31 // pred_check
          %p530 = pneg %p134
        $region50: #{tpu_custom_call.1} parent=31 // pred_check_branch
          %532 = sbr.rel (%p530) target = $region52
        $region51: #{tpu_custom_call.1} parent=31 // pred_region
          _
        $region52: #{tpu_custom_call.1} parent=31 // pred_fallthru
          _
      $region32: #{tpu_custom_call.1} parent=5 // pred_fallthru
        _
      %p533 = scmp.le.s32.totalorder 2, %s15
      // Predicated region
      $region53: #{tpu_custom_call.1} parent=5 // pred_check
        %p534 = pneg %p533
      $region54: #{tpu_custom_call.1} parent=5 // pred_check_branch
        %536 = sbr.rel (%p534) target = $region56
      $region55: #{tpu_custom_call.1} parent=5 // pred_region
        %s537 = ssub.s32 %s15, 2
        // Predicated region
        $region57: #{tpu_custom_call.1} parent=55 // pred_check
          %p538 = pneg %p140
        $region58: #{tpu_custom_call.1} parent=55 // pred_check_branch
          %540 = sbr.rel (%p538) target = $region60
        $region59: #{tpu_custom_call.1} parent=55 // pred_region
          %p541 = scmp.lt.s32.totalorder %s26, 1
          %s542 = scalar_select %p541, %s26, 1
          %s543 = scalar_lea.vmem %s3, %s542
        $region60: #{tpu_custom_call.1} parent=55 // pred_fallthru
          _
      $region56: #{tpu_custom_call.1} parent=5 // pred_fallthru
        _
    $region6: #{tpu_custom_call.1} parent=1 // loop_footer
      %s19 = sadd.s32 1, %s15
    $region7: #{tpu_custom_call.1} parent=1 // loop_footer_branch
      %14 = sbr.rel target = $region3
    $region8: #{tpu_custom_call.1} parent=1 // loop_exit
      _
    %544 = vsyncpa [#allocation4], 1
    %s545 = scalar_lea.sflag [#allocation4], 1
    %546 = vsyncpa %s545, 1
    %547 = vsyncpa [#allocation6], 1
    %s548 = scalar_lea.sflag [#allocation6], 1
    %549 = vsyncpa %s548, 1

</llo_original>
